<compile_context>
chip_gen: v6e
topology: v6e:2x2x1
jax: 0.10.0
libtpu: 0.0.40
codegen_flags: <defaults>
</compile_context>

<pallas_src>
import functools

import jax
import jax.numpy as jnp
from jax.experimental import pallas as pl
from jax.experimental.pallas import tpu as pltpu

BN_EPS = 1e-5


def _tile_rows(rows, cap=256):
    """Largest power-of-two tile (<= cap, >= 8) dividing `rows`, else `rows` (full)."""
    t = cap
    while t >= 8:
        if rows % t == 0:
            return t
        t //= 2
    return rows


# ------------------------------------------------------------------ matmul kernels

def _mm_kernel(p_ref, w_ref, b_ref, o_ref, *, act):
    y = jnp.dot(p_ref[...], w_ref[...], preferred_element_type=jnp.float32)
    y = y + b_ref[...]
    if act == "relu":
        y = jnp.maximum(y, 0.0)
    elif act == "tanh":
        y = jnp.tanh(y)
    o_ref[...] = y


def matmul_bias(patches, w_mat, bias, act="none"):
    m, k = patches.shape
    n_cols = w_mat.shape[1]
    tm = _tile_rows(m, cap=256)
    return pl.pallas_call(
        functools.partial(_mm_kernel, act=act),
        out_shape=jax.ShapeDtypeStruct((m, n_cols), jnp.float32),
        grid_spec=pltpu.PrefetchScalarGridSpec(
            num_scalar_prefetch=0,
            grid=(m // tm,),
            in_specs=[
                pl.BlockSpec((tm, k), lambda i: (i, 0)),
                pl.BlockSpec((k, n_cols), lambda i: (0, 0)),
                pl.BlockSpec((1, n_cols), lambda i: (0, 0)),
            ],
            out_specs=pl.BlockSpec((tm, n_cols), lambda i: (i, 0)),
        ),
        compiler_params=pltpu.CompilerParams(dimension_semantics=("parallel",)),
    )(patches, w_mat, bias.reshape(1, n_cols).astype(jnp.float32))


def _mm_stats_kernel(p_ref, w_ref, b_ref, o_ref, s_ref):
    y = jnp.dot(p_ref[...], w_ref[...], preferred_element_type=jnp.float32)
    y = y + b_ref[...]
    o_ref[...] = y
    s = jnp.sum(y, axis=0, keepdims=True)
    sq = jnp.sum(y * y, axis=0, keepdims=True)
    s_ref[...] = jnp.concatenate([s, sq], axis=0)[None]


def matmul_bias_stats(patches, w_mat, bias, seg_rows):
    """Conv matmul + bias, with fused per-tile (sum, sum-of-squares) partial BN stats."""
    m, k = patches.shape
    n_cols = w_mat.shape[1]
    tm = _tile_rows(seg_rows, cap=256)  # tiles never straddle segment boundaries
    nt = m // tm
    return pl.pallas_call(
        _mm_stats_kernel,
        out_shape=(
            jax.ShapeDtypeStruct((m, n_cols), jnp.float32),
            jax.ShapeDtypeStruct((nt, 2, n_cols), jnp.float32),
        ),
        grid_spec=pltpu.PrefetchScalarGridSpec(
            num_scalar_prefetch=0,
            grid=(nt,),
            in_specs=[
                pl.BlockSpec((tm, k), lambda i: (i, 0)),
                pl.BlockSpec((k, n_cols), lambda i: (0, 0)),
                pl.BlockSpec((1, n_cols), lambda i: (0, 0)),
            ],
            out_specs=[
                pl.BlockSpec((tm, n_cols), lambda i: (i, 0)),
                pl.BlockSpec((1, 2, n_cols), lambda i: (i, 0, 0)),
            ],
        ),
        compiler_params=pltpu.CompilerParams(dimension_semantics=("parallel",)),
    )(patches, w_mat, bias.reshape(1, n_cols).astype(jnp.float32))


# ------------------------------------------------------------------ affine (BN) kernel

def _affine_kernel(x_ref, s_ref, t_ref, o_ref, *, act):
    y = x_ref[...] * s_ref[0] + t_ref[0]
    if act == "relu":
        y = jnp.maximum(y, 0.0)
    elif act == "tanh":
        y = jnp.tanh(y)
    o_ref[...] = y.astype(o_ref.dtype)


def affine_act(x2d, scale_seg, shift_seg, seg_rows, act="relu", out_dtype=jnp.bfloat16):
    """Per-segment y = x*scale + shift (+act).  scale/shift: (num_segments, C)."""
    m, c = x2d.shape
    # Lane-densify narrow-channel layers (e.g. C=64) by folding rows into lanes.
    fold = 1
    if c < 128 and 128 % c == 0:
        f = 128 // c
        if m % f == 0 and seg_rows % f == 0:
            fold = f
            x2d = x2d.reshape(m // f, c * f)
            scale_seg = jnp.tile(scale_seg, (1, f))
            shift_seg = jnp.tile(shift_seg, (1, f))
            m, c = x2d.shape
            seg_rows //= f
    tm = _tile_rows(seg_rows, cap=1024)
    tiles_per_seg = seg_rows // tm
    y = pl.pallas_call(
        functools.partial(_affine_kernel, act=act),
        out_shape=jax.ShapeDtypeStruct((m, c), out_dtype),
        grid_spec=pltpu.PrefetchScalarGridSpec(
            num_scalar_prefetch=0,
            grid=(m // tm,),
            in_specs=[
                pl.BlockSpec((tm, c), lambda i: (i, 0)),
                pl.BlockSpec((1, 1, c), lambda i: (i // tiles_per_seg, 0, 0)),
                pl.BlockSpec((1, 1, c), lambda i: (i // tiles_per_seg, 0, 0)),
            ],
            out_specs=pl.BlockSpec((tm, c), lambda i: (i, 0)),
        ),
        compiler_params=pltpu.CompilerParams(dimension_semantics=("parallel",)),
    )(x2d, scale_seg[:, None, :], shift_seg[:, None, :])
    if fold > 1:
        y = y.reshape(m * fold, c // fold)
    return y


# ------------------------------------------------------------------ elementwise kernels

def _reparam_kernel(mu_ref, lv_ref, eps_ref, o_ref):
    o_ref[...] = mu_ref[...] + eps_ref[...] * jnp.exp(0.5 * lv_ref[...])


def _lerp_kernel(a_ref, b_ref, o_ref, *, lam):
    o_ref[...] = lam * a_ref[...] + (1.0 - lam) * b_ref[...]


def _elementwise_call(kernel, *arrays):
    shp = arrays[0].shape
    total = 1
    for d in shp:
        total *= d
    if total % 128 == 0:          # lane-dense layout: unmasked 128-wide stores
        rows, cols = total // 128, 128
    else:
        cols = shp[-1]
        rows = total // cols
    flats = [a.reshape(rows, cols) for a in arrays]
    tm = _tile_rows(rows, cap=1024)
    y = pl.pallas_call(
        kernel,
        out_shape=jax.ShapeDtypeStruct((rows, cols), jnp.float32),
        grid_spec=pltpu.PrefetchScalarGridSpec(
            num_scalar_prefetch=0,
            grid=(rows // tm,),
            in_specs=[pl.BlockSpec((tm, cols), lambda i: (i, 0)) for _ in flats],
            out_specs=pl.BlockSpec((tm, cols), lambda i: (i, 0)),
        ),
        compiler_params=pltpu.CompilerParams(dimension_semantics=("parallel",)),
    )(*flats)
    return y.reshape(shp)


def reparameterize(mu, logvar, eps):
    return _elementwise_call(_reparam_kernel, mu, logvar, eps)


def lerp(a, b, lam):
    return _elementwise_call(functools.partial(_lerp_kernel, lam=float(lam)), a, b)


# ------------------------------------------------------------------ conv glue

def _im2col(x, kh, kw, stride, pad):
    # x: (N, H, W, C) -> patches (N*OH*OW, kh*kw*C); patch-column order (kh, kw, C).
    if pad > 0:
        x = jnp.pad(x, ((0, 0), (pad, pad), (pad, pad), (0, 0)))
    n, h, w, c = x.shape
    oh = (h - kh) // stride + 1
    ow = (w - kw) // stride + 1
    cols = []
    for i in range(kh):
        for j in range(kw):
            cols.append(x[:, i:i + stride * oh:stride, j:j + stride * ow:stride, :])
    p = jnp.concatenate(cols, axis=-1)
    return p.reshape(n * oh * ow, kh * kw * c), (n, oh, ow)


def _conv_wmat(w):
    # Conv2d weight (Cout, Cin, KH, KW) -> (KH*KW*Cin, Cout) matching _im2col order.
    cout, cin, kh, kw = w.shape
    return jnp.transpose(w, (2, 3, 1, 0)).reshape(kh * kw * cin, cout)


def _deconv_wmat(w):
    # ConvTranspose2d(k=4,s=2,p=1) weight (Cin, Cout, 4, 4) rewritten as an equivalent
    # stride-1 3x3 conv weight with 4*Cout output columns (sub-pixel decomposition):
    # column index = (dy*2+dx)*Cout + co, rows ordered (u, v, Cin) matching _im2col(3,3,1,1).
    cin, cout, _, _ = w.shape
    wz = jnp.concatenate([w, jnp.zeros((cin, cout, 1, 4), w.dtype)], axis=2)  # ky=4 -> 0
    wz = jnp.concatenate([wz, jnp.zeros((cin, cout, 5, 1), w.dtype)], axis=3)  # kx=4 -> 0
    ky_idx = jnp.array([[3, 1, 4], [4, 2, 0]])  # [dy][u]
    kx_idx = jnp.array([[3, 1, 4], [4, 2, 0]])  # [dx][v]
    weq = wz[:, :, ky_idx, :]            # (Cin, Cout, 2, 3, 5)
    weq = weq[:, :, :, :, kx_idx]        # (Cin, Cout, 2, 3, 2, 3) = (ci, co, dy, u, dx, v)
    weq = jnp.transpose(weq, (3, 5, 0, 2, 4, 1))  # (u, v, ci, dy, dx, co)
    return weq.reshape(9 * cin, 4 * cout)


def _bn_scale_shift(stats, num_segments, m_per_seg, gamma, beta, groups=1):
    # stats: (num_tiles, 2, Ncols) per-tile partial (sum, sumsq)
    nt, _, ncols = stats.shape
    tps = nt // num_segments
    s = stats.reshape(num_segments, tps, 2, ncols).sum(axis=1)        # (nseg, 2, Ncols)
    if groups > 1:
        c = ncols // groups
        s = s.reshape(num_segments, 2, groups, c).sum(axis=2)         # (nseg, 2, C)
    mean = s[:, 0, :] / m_per_seg
    # TODO(synk): E[x^2]-mean^2 in f32; switch to two-pass if BN drift is observed.
    var = s[:, 1, :] / m_per_seg - mean * mean
    inv = jax.lax.rsqrt(var + BN_EPS)
    scale = gamma[None, :] * inv
    shift = beta[None, :] - mean * scale
    return scale, shift


def conv_bn_relu(x, w, b, gamma, beta, stride, pad, num_segments):
    cout, cin, kh, kw = w.shape
    patches, (n, oh, ow) = _im2col(x.astype(jnp.bfloat16), kh, kw, stride, pad)
    w_mat = _conv_wmat(w).astype(jnp.bfloat16)
    seg_rows = (n // num_segments) * oh * ow
    y, stats = matmul_bias_stats(patches, w_mat, b, seg_rows)
    scale, shift = _bn_scale_shift(stats, num_segments, float(seg_rows), gamma, beta)
    h = affine_act(y, scale, shift, seg_rows, act="relu", out_dtype=jnp.bfloat16)
    return h.reshape(n, oh, ow, cout)


def deconv_bn_relu(x, w, b, gamma, beta, num_segments):
    # ConvTranspose2d(k=4,s=2,p=1) + BN(train) + ReLU via sub-pixel decomposition.
    cin, cout = w.shape[0], w.shape[1]
    w_mat = _deconv_wmat(w).astype(jnp.bfloat16)                  # (9*Cin, 4*Cout)
    bias4 = jnp.tile(b, 4)
    patches, (n, oh, ow) = _im2col(x.astype(jnp.bfloat16), 3, 3, 1, 1)
    seg_rows = (n // num_segments) * oh * ow
    y, stats = matmul_bias_stats(patches, w_mat, bias4, seg_rows)  # y: (M, 4*Cout)
    scale, shift = _bn_scale_shift(stats, num_segments, float(seg_rows * 4),
                                   gamma, beta, groups=4)
    scale4 = jnp.tile(scale, (1, 4))
    shift4 = jnp.tile(shift, (1, 4))
    h = affine_act(y, scale4, shift4, seg_rows, act="relu", out_dtype=jnp.bfloat16)
    # pixel shuffle: (N, oh, ow, dy, dx, Cout) -> (N, 2*oh, 2*ow, Cout)
    h = h.reshape(n, oh, ow, 2, 2, cout)
    h = jnp.transpose(h, (0, 1, 3, 2, 4, 5)).reshape(n, 2 * oh, 2 * ow, cout)
    return h


def conv_plain(x, w, b, stride, pad, act="none"):
    cout, cin, kh, kw = w.shape
    patches, (n, oh, ow) = _im2col(x.astype(jnp.bfloat16), kh, kw, stride, pad)
    w_mat = _conv_wmat(w).astype(jnp.bfloat16)
    y = matmul_bias(patches, w_mat, b, act=act)
    return y.reshape(n, oh, ow, cout)


# ------------------------------------------------------------------ model

def encode(p, x_nhwc, eps, num_segments):
    h = conv_bn_relu(x_nhwc, p["ew1"], p["eb1"], p["eg1"], p["ebt1"], 2, 1, num_segments)
    h = conv_bn_relu(h, p["ew2"], p["eb2"], p["eg2"], p["ebt2"], 2, 1, num_segments)
    h = conv_bn_relu(h, p["ew3"], p["eb3"], p["eg3"], p["ebt3"], 2, 1, num_segments)

    # merged mu / logvar 1x1 conv (single matmul, lane-dense 2*z_dim output)
    n, hh, ww, c = h.shape
    z_dim = p["ebmu"].shape[0]
    w_mu = p["ewmu"].reshape(z_dim, c)
    w_lv = p["ewlv"].reshape(z_dim, c)
    w_mat = jnp.concatenate([w_mu, w_lv], axis=0).T.astype(jnp.bfloat16)  # (C, 2z)
    bias = jnp.concatenate([p["ebmu"], p["eblv"]])
    y = matmul_bias(h.reshape(n * hh * ww, c).astype(jnp.bfloat16), w_mat, bias)
    mu = y[:, :z_dim].reshape(n, hh, ww, z_dim)
    logvar = y[:, z_dim:].reshape(n, hh, ww, z_dim)
    z = reparameterize(mu, logvar, eps)
    return z, mu, logvar


def decode(p, z_nhwc, num_segments):
    h = deconv_bn_relu(z_nhwc, p["dw1"], p["db1"], p["dg1"], p["dbt1"], num_segments)
    h = deconv_bn_relu(h, p["dw2"], p["db2"], p["dg2"], p["dbt2"], num_segments)
    h = deconv_bn_relu(h, p["dw3"], p["db3"], p["dg3"], p["dbt3"], num_segments)
    return conv_plain(h, p["dw4"], p["db4"], 1, 1, act="tanh")


def mixup_vae_forward(p, x_nchw, targets, lam, key, mode="train"):
    x = jnp.transpose(x_nchw, (0, 2, 3, 1)).astype(jnp.float32)  # NCHW -> NHWC
    B, H, W, _ = x.shape
    z_dim = p["ewmu"].shape[0]
    zh, zw = H // 8, W // 8
    to_nchw = lambda a: jnp.transpose(a, (0, 3, 1, 2))
    k1, k2 = jax.random.split(key, 2)

    if mode == "test":
        eps = jax.random.normal(k1, (B, zh, zw, z_dim), jnp.float32)
        z, _, _ = encode(p, x, eps, num_segments=1)
        return to_nchw(decode(p, z, num_segments=1))

    # TODO(synk): mixup_aligned_recon is not defined in the source; implemented as
    # standard latent mixup with a (deterministic) random permutation of the batch.
    indices = jax.random.permutation(k2, B)

    # batched encode (x and x[indices] as two segments; per-segment BN statistics
    # are identical to the two original separate calls since indices is a permutation)
    x_all = jnp.concatenate([x, x[indices]], axis=0)
    eps_all = jax.random.normal(k1, (2 * B, zh, zw, z_dim), jnp.float32)
    z_all, mu_all, lv_all = encode(p, x_all, eps_all, num_segments=2)
    z, z_shuf = z_all[:B], z_all[B:]
    mu, logvar = mu_all[:B], lv_all[:B]

    z_mix = lerp(z, z[indices], lam)

    # batched decode (z, z_mix, z_shuf as three segments with per-segment BN)
    z_dec = jnp.concatenate([z, z_mix, z_shuf], axis=0)
    recon_all = decode(p, z_dec, num_segments=3)
    recon_orig = recon_all[:B]
    recon_mix = recon_all[B:2 * B]
    x_b = recon_all[2 * B:]
    x_semantic_mix = lerp(recon_orig, x_b, lam)

    return (to_nchw(recon_orig), to_nchw(recon_mix), x_nchw,
            to_nchw(x_semantic_mix), to_nchw(mu), to_nchw(logvar))


# ------------------------------------------------------------------ params

def init_params(key, z_dim=32):
    def nrm(k, shape, scale=0.05):
        return scale * jax.random.normal(k, shape, jnp.float32)

    ks = iter(jax.random.split(key, 32))
    p = {}
    # encoder (Conv2d weight: (Cout, Cin, KH, KW))
    p["ew1"], p["eb1"] = nrm(next(ks), (64, 3, 4, 4)), nrm(next(ks), (64,))
    p["eg1"], p["ebt1"] = jnp.ones((64,)), jnp.zeros((64,))
    p["ew2"], p["eb2"] = nrm(next(ks), (128, 64, 4, 4)), nrm(next(ks), (128,))
    p["eg2"], p["ebt2"] = jnp.ones((128,)), jnp.zeros((128,))
    p["ew3"], p["eb3"] = nrm(next(ks), (256, 128, 4, 4)), nrm(next(ks), (256,))
    p["eg3"], p["ebt3"] = jnp.ones((256,)), jnp.zeros((256,))
    p["ewmu"], p["ebmu"] = nrm(next(ks), (z_dim, 256, 1, 1)), nrm(next(ks), (z_dim,))
    p["ewlv"], p["eblv"] = nrm(next(ks), (z_dim, 256, 1, 1)), nrm(next(ks), (z_dim,))
    # decoder (ConvTranspose2d weight: (Cin, Cout, KH, KW))
    p["dw1"], p["db1"] = nrm(next(ks), (z_dim, 256, 4, 4)), nrm(next(ks), (256,))
    p["dg1"], p["dbt1"] = jnp.ones((256,)), jnp.zeros((256,))
    p["dw2"], p["db2"] = nrm(next(ks), (256, 128, 4, 4)), nrm(next(ks), (128,))
    p["dg2"], p["dbt2"] = jnp.ones((128,)), jnp.zeros((128,))
    p["dw3"], p["db3"] = nrm(next(ks), (128, 64, 4, 4)), nrm(next(ks), (64,))
    p["dg3"], p["dbt3"] = jnp.ones((64,)), jnp.zeros((64,))
    p["dw4"], p["db4"] = nrm(next(ks), (3, 64, 3, 3)), nrm(next(ks), (3,))
    return p


# ------------------------------------------------------------------ main

if __name__ == "__main__":
    key = jax.random.PRNGKey(0)
    kp, kx, kf = jax.random.split(key, 3)

    z_dim = 32
    B, C, Hs, Ws = 2, 3, 16, 16           # small stand-in for (B,3,128,128)
    params = init_params(kp, z_dim=z_dim)

    x = jax.random.normal(kx, (B, C, Hs, Ws), jnp.float32)
    targets = jnp.array([0, 1], jnp.int32)
    lam = 0.7

    outs = mixup_vae_forward(params, x, targets, lam, kf, mode="train")
    outs = jax.block_until_ready(outs)

    recon_orig, recon_mix, x_out, x_sem_mix, mu, logvar = outs
    assert recon_orig.shape == (B, 3, Hs, Ws)
    assert recon_mix.shape == (B, 3, Hs, Ws)
    assert x_sem_mix.shape == (B, 3, Hs, Ws)
    assert mu.shape == (B, z_dim, Hs // 8, Ws // 8)
    assert logvar.shape == (B, z_dim, Hs // 8, Ws // 8)
    print("KERNEL_OK")
</pallas_src>

<mosaic_0001>
module attributes {stable_mosaic.version = 11 : i64} {
  func.func @_mm_stats_kernel(%arg0: i32, %arg1: memref<128x48xbf16, #tpu.memory_space<vmem>>, %arg2: memref<48x64xbf16, #tpu.memory_space<vmem>>, %arg3: memref<1x64xf32, #tpu.memory_space<vmem>>, %arg4: memref<128x64xf32, #tpu.memory_space<vmem>>, %arg5: memref<1x2x64xf32, #tpu.memory_space<vmem>>) attributes {dimension_semantics = [#tpu.dimension_semantics<parallel>], iteration_bounds = array<i64: 2>, scalar_prefetch = 0 : i64, scratch_operands = 0 : i64, tpu.core_type = #tpu.core_type<tc>, window_params = [{transform_indices = @transform_0, window_bounds = array<i64: 128, 48>}, {pipeline_mode = #tpu.pipeline_mode<synchronous>, transform_indices = @transform_1, window_bounds = array<i64: 48, 64>}, {pipeline_mode = #tpu.pipeline_mode<synchronous>, transform_indices = @transform_2, window_bounds = array<i64: 1, 64>}, {transform_indices = @transform_3, window_bounds = array<i64: 128, 64>}, {transform_indices = @transform_4, window_bounds = array<i64: 1, 2, 64>}]} {
    %c0 = arith.constant 0 : index
    %c0_0 = arith.constant 0 : index
    %0 = vector.load %arg1[%c0, %c0_0] : memref<128x48xbf16, #tpu.memory_space<vmem>>, vector<128x48xbf16>
    %c0_1 = arith.constant 0 : index
    %c0_2 = arith.constant 0 : index
    %1 = vector.load %arg2[%c0_1, %c0_2] : memref<48x64xbf16, #tpu.memory_space<vmem>>, vector<48x64xbf16>
    %cst = arith.constant dense<0.000000e+00> : vector<128x64xf32>
    %2 = tpu.matmul %0, %1, %cst {dimension_numbers = #tpu.dot_dimension_numbers<[1], [0], [0], [1], [0, 0, 1, 1], [], []>} : vector<128x48xbf16>, vector<48x64xbf16>, vector<128x64xf32> -> vector<128x64xf32>
    %c0_3 = arith.constant 0 : index
    %c0_4 = arith.constant 0 : index
    %3 = vector.load %arg3[%c0_3, %c0_4] : memref<1x64xf32, #tpu.memory_space<vmem>>, vector<1x64xf32>
    %4 = vector.broadcast %3 : vector<1x64xf32> to vector<128x64xf32>
    %5 = arith.addf %2, %4 : vector<128x64xf32>
    %c0_5 = arith.constant 0 : index
    %c0_6 = arith.constant 0 : index
    %6 = vector.load %arg4[%c0_5, %c0_6] : memref<128x64xf32, #tpu.memory_space<vmem>>, vector<128x64xf32>
    tpu.vector_store %arg4[%c0_5, %c0_6], %5 {strides = array<i32>} : memref<128x64xf32, #tpu.memory_space<vmem>>, vector<128x64xf32>,
    %cst_7 = arith.constant dense<0.000000e+00> : vector<64xf32>
    %7 = vector.multi_reduction <add>, %5, %cst_7 [0] : vector<128x64xf32> to vector<64xf32>
    %8 = vector.shape_cast %7 : vector<64xf32> to vector<1x64xf32>
    %9 = arith.mulf %5, %5 : vector<128x64xf32>
    %cst_8 = arith.constant dense<0.000000e+00> : vector<64xf32>
    %10 = vector.multi_reduction <add>, %9, %cst_8 [0] : vector<128x64xf32> to vector<64xf32>
    %11 = vector.shape_cast %10 : vector<64xf32> to vector<1x64xf32>
    %12 = tpu.concatenate %8, %11 in 0 : vector<1x64xf32>, vector<1x64xf32> -> vector<2x64xf32>
    %13 = vector.shape_cast %12 : vector<2x64xf32> to vector<1x2x64xf32>
    %c0_9 = arith.constant 0 : index
    %c0_10 = arith.constant 0 : index
    %c0_11 = arith.constant 0 : index
    %14 = vector.load %arg5[%c0_9, %c0_10, %c0_11] : memref<1x2x64xf32, #tpu.memory_space<vmem>>, vector<1x2x64xf32>
    tpu.vector_store %arg5[%c0_9, %c0_10, %c0_11], %13 {strides = array<i32>} : memref<1x2x64xf32, #tpu.memory_space<vmem>>, vector<1x2x64xf32>,
    return
  }
  func.func @transform_0(%arg0: i32) -> (i32, i32) {
    %c0_i32 = arith.constant 0 : i32
    %c0_i32_0 = arith.constant 0 : i32
    return %arg0, %c0_i32 : i32, i32
  }
  func.func @transform_1(%arg0: i32) -> (i32, i32) {
    %c0_i32 = arith.constant 0 : i32
    %c0_i32_0 = arith.constant 0 : i32
    %c0_i32_1 = arith.constant 0 : i32
    return %c0_i32, %c0_i32_0 : i32, i32
  }
  func.func @transform_2(%arg0: i32) -> (i32, i32) {
    %c0_i32 = arith.constant 0 : i32
    %c0_i32_0 = arith.constant 0 : i32
    %c0_i32_1 = arith.constant 0 : i32
    return %c0_i32, %c0_i32_0 : i32, i32
  }
  func.func @transform_3(%arg0: i32) -> (i32, i32) {
    %c0_i32 = arith.constant 0 : i32
    %c0_i32_0 = arith.constant 0 : i32
    return %arg0, %c0_i32 : i32, i32
  }
  func.func @transform_4(%arg0: i32) -> (i32, i32, i32) {
    %c0_i32 = arith.constant 0 : i32
    %c0_i32_0 = arith.constant 0 : i32
    %c0_i32_1 = arith.constant 0 : i32
    return %arg0, %c0_i32, %c0_i32_0 : i32, i32, i32
  }
}

</mosaic_0001>

<llo_original>
// kernel: tpu_custom_call.1
$region0: #{tpu_custom_call.1}
  #allocation0 [shape = 'u32[]', space=smem, size = 0x4, offset = 0x4, fixed_abs, tag = 'smem constant byte address 0x4 - core index']
  #allocation1 [shape = 'u32[144,128]{1,0:T(1,128)}', space=vmem, size = 0x12000, scoped, tag = 'internal scratch']
  %s0 = inlined_call_operand.vmem [shape: bf16[256,48], index: 0, kind: input, shape index: {}]
  %s1 = inlined_call_operand.vmem [shape: bf16[48,64], index: 1, kind: input, shape index: {}]
  %s2 = inlined_call_operand.vmem [shape: f32[1,64], index: 2, kind: input, shape index: {}]
  %s3 = inlined_call_operand.vmem [shape: f32[256,64], index: 3, kind: output, shape index: {0}]
  %s4 = inlined_call_operand.hbm [shape: f32[2,2,64], index: 4, kind: output, shape index: {1}]
  %5 = xla_tuple %s3, %s4
  %s6 = sld [smem:[#allocation0]]
  $region53: #{tpu_custom_call.1} parent=0
    _
  %s8 = ssub.s32 1, %s6
  %s9 = scalar_select 0, %s8, %s6
  $region1: #{tpu_custom_call.1} parent=0
    #allocation2 [shape = 'u8[2048]{0}', space=vmem, size = 0x800, scoped, tag = 'output window, operand 1']
    #allocation3 [shape = 's32[2]{0}', space=sflag, size = 0x8, scoped, tag = 'scoped memory for tpu_custom_call.1']
    %10 = vsyncpa [#allocation3], 0
    %s11 = scalar_lea.sflag [#allocation3], 1
    %12 = vsyncpa %s11, 0
    loop: start=0, step=1, limit=4
    $region2: #{tpu_custom_call.1} parent=1 // loop_pre_header
      _
    $region3: #{tpu_custom_call.1} parent=1 // loop_header
      %s14 = sphi 0, %s18
      %p15 = scmp.ge.s32.totalorder %s14, 4
      %s24 = sphi 0, %s26
      %s27 = sphi 0, %s24
      %s28 = sphi 0, %s27
      %s44 = sphi 0, %s28
      %s48 = sphi 0, %s48
      %s50 = sphi 0, %s48
      %s51 = sphi 0, %s50
      %s65 = sphi 0, %s51
      %s69 = sphi 0, %s69
      %s71 = sphi 0, %s69
      %s72 = sphi 0, %s71
      %s86 = sphi 0, %s72
      %s92 = sphi 0, %s94
      %s95 = sphi 0, %s92
      %s96 = sphi 0, %s95
      %s112 = sphi 0, %s96
      %s118 = sphi 0, %s120
      %s121 = sphi 0, %s118
      %s122 = sphi 0, %s121
      %s138 = sphi 0, %s122
    $region4: #{tpu_custom_call.1} parent=1 // loop_header_branch
      %17 = sbr.rel (%p15) target = $region8
    $region5: #{tpu_custom_call.1} parent=1 // loop_body
      %s19 = ssub.s32 %s14, 1
      %s20 = ssub.s32 %s14, 2
      %s21 = sadd.s32 %s14, 1
      %s22 = ssub.s32 %s14, %s21
      %p23 = scmp.eq.s32.totalorder %s22, 0
      %s25 = sadd.s32 %s24, 1
      %s26 = scalar_select %p23, %s24, %s25
      %p29 = pneg %p23
      %p30 = scmp.eq.s32.totalorder %s14, 1
      %p31 = por %p29, %p30
      %p32 = scmp.ne.s32.totalorder %s24, %s27
      %p33 = scmp.eq.s32.totalorder %s14, 0
      %p34 = por %p32, %p33
      %p35 = scmp.ne.s32.totalorder %s24, %s27
      %p36 = scmp.eq.s32.totalorder %s19, 1
      %p37 = por %p35, %p36
      %p38 = scmp.ne.s32.totalorder %s27, %s28
      %p39 = scmp.eq.s32.totalorder %s19, 0
      %p40 = por %p38, %p39
      %p41 = scmp.ne.s32.totalorder %s27, %s28
      %p42 = scmp.eq.s32.totalorder %s20, 1
      %p43 = por %p41, %p42
      %p45 = scmp.ne.s32.totalorder %s28, %s44
      %p46 = scmp.eq.s32.totalorder %s20, 0
      %p47 = por %p45, %p46
      %s49 = sadd.s32 %s48, 1
      %p52 = scmp.eq.s32.totalorder %s14, 1
      %p53 = scmp.ne.s32.totalorder %s48, %s50
      %p54 = scmp.eq.s32.totalorder %s14, 0
      %p55 = por %p53, %p54
      %p56 = scmp.ne.s32.totalorder %s48, %s50
      %p57 = scmp.eq.s32.totalorder %s19, 1
      %p58 = por %p56, %p57
      %p59 = scmp.ne.s32.totalorder %s50, %s51
      %p60 = scmp.eq.s32.totalorder %s19, 0
      %p61 = por %p59, %p60
      %p62 = scmp.ne.s32.totalorder %s50, %s51
      %p63 = scmp.eq.s32.totalorder %s20, 1
      %p64 = por %p62, %p63
      %p66 = scmp.ne.s32.totalorder %s51, %s65
      %p67 = scmp.eq.s32.totalorder %s20, 0
      %p68 = por %p66, %p67
      %s70 = sadd.s32 %s69, 1
      %p73 = scmp.eq.s32.totalorder %s14, 1
      %p74 = scmp.ne.s32.totalorder %s69, %s71
      %p75 = scmp.eq.s32.totalorder %s14, 0
      %p76 = por %p74, %p75
      %p77 = scmp.ne.s32.totalorder %s69, %s71
      %p78 = scmp.eq.s32.totalorder %s19, 1
      %p79 = por %p77, %p78
      %p80 = scmp.ne.s32.totalorder %s71, %s72
      %p81 = scmp.eq.s32.totalorder %s19, 0
      %p82 = por %p80, %p81
      %p83 = scmp.ne.s32.totalorder %s71, %s72
      %p84 = scmp.eq.s32.totalorder %s20, 1
      %p85 = por %p83, %p84
      %p87 = scmp.ne.s32.totalorder %s72, %s86
      %p88 = scmp.eq.s32.totalorder %s20, 0
      %p89 = por %p87, %p88
      %s90 = ssub.s32 %s14, %s21
      %p91 = scmp.eq.s32.totalorder %s90, 0
      %s93 = sadd.s32 %s92, 1
      %s94 = scalar_select %p91, %s92, %s93
      %p97 = pneg %p91
      %p98 = scmp.eq.s32.totalorder %s14, 1
      %p99 = por %p97, %p98
      %p100 = scmp.ne.s32.totalorder %s92, %s95
      %p101 = scmp.eq.s32.totalorder %s14, 0
      %p102 = por %p100, %p101
      %p103 = scmp.ne.s32.totalorder %s92, %s95
      %p104 = scmp.eq.s32.totalorder %s19, 1
      %p105 = por %p103, %p104
      %p106 = scmp.ne.s32.totalorder %s95, %s96
      %p107 = scmp.eq.s32.totalorder %s19, 0
      %p108 = por %p106, %p107
      %p109 = scmp.ne.s32.totalorder %s95, %s96
      %p110 = scmp.eq.s32.totalorder %s20, 1
      %p111 = por %p109, %p110
      %p113 = scmp.ne.s32.totalorder %s96, %s112
      %p114 = scmp.eq.s32.totalorder %s20, 0
      %p115 = por %p113, %p114
      %s116 = ssub.s32 %s14, %s21
      %p117 = scmp.eq.s32.totalorder %s116, 0
      %s119 = sadd.s32 %s118, 1
      %s120 = scalar_select %p117, %s118, %s119
      %p123 = pneg %p117
      %p124 = scmp.eq.s32.totalorder %s14, 1
      %p125 = por %p123, %p124
      %p126 = scmp.ne.s32.totalorder %s118, %s121
      %p127 = scmp.eq.s32.totalorder %s14, 0
      %p128 = por %p126, %p127
      %p129 = scmp.ne.s32.totalorder %s118, %s121
      %p130 = scmp.eq.s32.totalorder %s19, 1
      %p131 = por %p129, %p130
      %p132 = scmp.ne.s32.totalorder %s121, %s122
      %p133 = scmp.eq.s32.totalorder %s19, 0
      %p134 = por %p132, %p133
      %p135 = scmp.ne.s32.totalorder %s121, %s122
      %p136 = scmp.eq.s32.totalorder %s20, 1
      %p137 = por %p135, %p136
      %p139 = scmp.ne.s32.totalorder %s122, %s138
      %p140 = scmp.eq.s32.totalorder %s20, 0
      %p141 = por %p139, %p140
      %p142 = scmp.le.s32.totalorder 1, %s14
      %p143 = scmp.lt.s32.totalorder %s14, 3
      %p144 = pnand %p142, %p143
      %p145 = pneg %p144
      // Predicated region
      $region9: #{tpu_custom_call.1} parent=5 // pred_check
        _
      $region10: #{tpu_custom_call.1} parent=5 // pred_check_branch
        %147 = sbr.rel (%p144) target = $region12
      $region11: #{tpu_custom_call.1} parent=5 // pred_region
        %s148 = ssub.s32 %s14, 1
        // Predicated region
        $region13: #{tpu_custom_call.1} parent=11 // pred_check
          %p149 = pneg %p61
        $region14: #{tpu_custom_call.1} parent=11 // pred_check_branch
          %151 = sbr.rel (%p149) target = $region16
        $region15: #{tpu_custom_call.1} parent=11 // pred_region
          _
        $region16: #{tpu_custom_call.1} parent=11 // pred_fallthru
          _
        // Predicated region
        $region17: #{tpu_custom_call.1} parent=11 // pred_check
          %p152 = pneg %p82
        $region18: #{tpu_custom_call.1} parent=11 // pred_check_branch
          %154 = sbr.rel (%p152) target = $region20
        $region19: #{tpu_custom_call.1} parent=11 // pred_region
          _
        $region20: #{tpu_custom_call.1} parent=11 // pred_fallthru
          _
      $region12: #{tpu_custom_call.1} parent=5 // pred_fallthru
        _
      %p155 = scmp.lt.s32.totalorder %s14, 2
      // Predicated region
      $region21: #{tpu_custom_call.1} parent=5 // pred_check
        %p156 = pneg %p155
      $region22: #{tpu_custom_call.1} parent=5 // pred_check_branch
        %158 = sbr.rel (%p156) target = $region24
      $region23: #{tpu_custom_call.1} parent=5 // pred_region
        // Predicated region
        $region25: #{tpu_custom_call.1} parent=23 // pred_check
          %p159 = pneg %p34
        $region26: #{tpu_custom_call.1} parent=23 // pred_check_branch
          %161 = sbr.rel (%p159) target = $region28
        $region27: #{tpu_custom_call.1} parent=23 // pred_region
          %s162 = smul.u32 16, %s14
          %p163 = scmp.lt.s32.totalorder %s162, 31
          %s164 = scalar_select %p163, %s162, 31
          %s165 = smul.addr %s164, 4
          %s166 = scalar_lea.vmem %s0, %s165
          %s167 = smul.u32 16, %s14
        $region28: #{tpu_custom_call.1} parent=23 // pred_fallthru
          _
      $region24: #{tpu_custom_call.1} parent=5 // pred_fallthru
        _
      %p168 = scmp.le.s32.totalorder 1, %s14
      %p169 = scmp.lt.s32.totalorder %s14, 3
      %p170 = pnand %p168, %p169
      %p171 = pneg %p170
      // Predicated region
      $region29: #{tpu_custom_call.1} parent=5 // pred_check
        _
      $region30: #{tpu_custom_call.1} parent=5 // pred_check_branch
        %173 = sbr.rel (%p170) target = $region32
      $region31: #{tpu_custom_call.1} parent=5 // pred_region
        %s174 = ssub.s32 %s14, 1
        %s175 = smul.u32 16, %s19
        %p176 = scmp.lt.s32.totalorder %s175, 31
        %s177 = scalar_select %p176, %s175, 31
        %s178 = smul.addr %s177, 4
        %s179 = scalar_lea.vmem %s0, %s178
        %p180 = pneg %p40
        %p181 = pneg %p37
        %p182 = pneg %p61
        %p183 = pneg %p58
        %p184 = pneg %p82
        %p185 = pneg %p79
        %p186 = pneg %p108
        %p187 = pneg %p105
        %s188 = smul.u32 16, %s19
        %p189 = scmp.lt.s32.totalorder %s188, 31
        %s190 = scalar_select %p189, %s188, 31
        %s191 = smul.addr %s190, 8
        %s192 = scalar_lea.vmem %s3, %s191
        %p193 = pneg %p134
        %p194 = pneg %p131
        %s195 = sand.u32 %s121, 1
        %s196 = scalar_lea.sflag [#allocation3], %s195
        %s197 = sand.u32 %s121, 1
        %s198 = smul.addr %s197, 2
        %s199 = scalar_lea.vmem [#allocation2], %s198
        %s200 = smul.u32 16, %s19
        %p201 = scmp.lt.s32.totalorder %s200, 31
        %s202 = scalar_select %p201, %s200, 31
        %s203 = smul.addr %s202, 4
        %s204 = scalar_lea.vmem %s0, %s203
        %s205 = smul.u32 16, %s19
        %s206 = smul.u32 16, %s19
        %p207 = scmp.lt.s32.totalorder %s206, 31
        %s208 = scalar_select %p207, %s206, 31
        %s209 = smul.addr %s208, 8
        %s210 = scalar_lea.vmem %s3, %s209
        %s211 = smul.u32 16, %s19
        %v213 = vld [vmem:[%s204] sm:$0xf]
        %v214 = vld [vmem:[%s204 + $0x4] sm:$0xf]
        %v215 = vld [vmem:[%s204 + $0x8] sm:$0xf]
        %v216 = vld [vmem:[%s204 + $0xc] sm:$0xf]
        %v217 = vld [vmem:[%s204 + $0x10] sm:$0xf]
        %v218 = vld [vmem:[%s204 + $0x14] sm:$0xf]
        %v219 = vld [vmem:[%s204 + $0x18] sm:$0xf]
        %v220 = vld [vmem:[%s204 + $0x1c] sm:$0xf]
        %v221 = vld [vmem:[%s204 + $0x20] sm:$0xf]
        %v222 = vld [vmem:[%s204 + $0x24] sm:$0xf]
        %v223 = vld [vmem:[%s204 + $0x28] sm:$0xf]
        %v224 = vld [vmem:[%s204 + $0x2c] sm:$0xf]
        %v225 = vld [vmem:[%s204 + $0x30] sm:$0xf]
        %v226 = vld [vmem:[%s204 + $0x34] sm:$0xf]
        %v227 = vld [vmem:[%s204 + $0x38] sm:$0xf]
        %v228 = vld [vmem:[%s204 + $0x3c] sm:$0xf]
        %v229 = vld [vmem:[%s1] sm:$0xf]
        %v230 = vld [vmem:[%s1 + $0x4] sm:$0xf]
        %v231 = vld [vmem:[%s1 + $0x8] sm:$0xf]
        %v232 = vld [vmem:[%s1 + $0xc] sm:$0xf]
        %v233 = vld [vmem:[%s1 + $0x10] sm:$0xf]
        %v234 = vld [vmem:[%s1 + $0x14] sm:$0xf]
        %v235 = vld [vmem:[%s2] sm:$0x1]
        %v237 = vlaneseq
        %v238 = vshrl.u32 %v237, 7
        %v239 = vsub.s32 0, %v238
        %v240 = vrot.slane %v235, %v239
        %v258 = vunpack.c.l.b16 %v213
        %v259 = vunpack.c.l.b16 %v214
        %v260 = vunpack.c.l.b16 %v215
        %v261 = vunpack.c.l.b16 %v216
        %v262 = vunpack.c.l.b16 %v217
        %v263 = vunpack.c.l.b16 %v218
        %v264 = vunpack.c.l.b16 %v219
        %v265 = vunpack.c.l.b16 %v220
        %v266 = vunpack.c.l.b16 %v221
        %v267 = vunpack.c.l.b16 %v222
        %v268 = vunpack.c.l.b16 %v223
        %v269 = vunpack.c.l.b16 %v224
        %v270 = vunpack.c.l.b16 %v225
        %v271 = vunpack.c.l.b16 %v226
        %v272 = vunpack.c.l.b16 %v227
        %v273 = vunpack.c.l.b16 %v228
        %v274 = vpack.c.b16 %v259, %v258
        %v275 = vpack.c.b16 %v261, %v260
        %v276 = vpack.c.b16 %v263, %v262
        %v277 = vpack.c.b16 %v265, %v264
        %v278 = vpack.c.b16 %v267, %v266
        %v279 = vpack.c.b16 %v269, %v268
        %v280 = vpack.c.b16 %v271, %v270
        %v281 = vpack.c.b16 %v273, %v272
        %v288 = vunpack.c.l.b16 %v229
        %v289 = vunpack.c.l.b16 %v230
        %v290 = vunpack.c.l.b16 %v231
        %v291 = vunpack.c.l.b16 %v232
        %v292 = vunpack.c.l.b16 %v233
        %v293 = vunpack.c.l.b16 %v234
        %v294 = vpack.c.b16 %v289, %v288
        %v295 = vpack.c.b16 %v291, %v290
        %v296 = vpack.c.b16 %v293, %v292
        %vm300 = vcmask 392192
        %v302 = vsel %vm300, %v274, 0
        %v305 = vsel %vm300, %v275, 0
        %v308 = vsel %vm300, %v276, 0
        %v311 = vsel %vm300, %v277, 0
        %v314 = vsel %vm300, %v278, 0
        %v317 = vsel %vm300, %v279, 0
        %v320 = vsel %vm300, %v280, 0
        %v323 = vsel %vm300, %v281, 0
        %325 = vmatprep.subr.bf16.mxu0 0
        %326 = vmatpush1.bf16.msra.mxu0 0
        %327 = vmatprep.subr.bf16.mxu0 0
        %328 = vmatpush1.bf16.msra.mxu0 0
        %329 = vmatprep.subr.bf16.mxu0 0
        %330 = vmatpush1.bf16.msra.mxu0 0
        %331 = vmatprep.subr.bf16.mxu0 0
        %332 = vmatpush1.bf16.msra.mxu0 0
        %333 = vmatprep.subr.bf16.mxu0 0
        %334 = vmatpush1.bf16.msra.mxu0 0
        %335 = vmatprep.subr.bf16.mxu0 0
        %336 = vmatpush1.bf16.msra.mxu0 %v296
        %337 = vmatprep.subr.bf16.mxu0 0
        %338 = vmatpush1.bf16.msra.mxu0 %v295
        %339 = vmatprep.subr.bf16.mxu0 0
        %340 = vmatpush1.bf16.msra.mxu0 %v294
        %341 = vmatprep.subr.bf16.mxu0 0
        %342 = vmatpush2.bf16.msra.mxu0 0
        %343 = vmatprep.subr.bf16.mxu0 0
        %344 = vmatpush2.bf16.msra.mxu0 0
        %345 = vmatprep.subr.bf16.mxu0 0
        %346 = vmatpush2.bf16.msra.mxu0 0
        %347 = vmatprep.subr.bf16.mxu0 0
        %348 = vmatpush2.bf16.msra.mxu0 0
        %349 = vmatprep.subr.bf16.mxu0 0
        %350 = vmatpush2.bf16.msra.mxu0 0
        %351 = vmatprep.subr.bf16.mxu0 0
        %352 = vmatpush2.bf16.msra.mxu0 0
        %353 = vmatprep.subr.bf16.mxu0 0
        %354 = vmatpush2.bf16.msra.mxu0 0
        %355 = vmatprep.subr.bf16.mxu0 0
        %356 = vmatpush2.bf16.msra.mxu0 0
        %357 = vmatprep.mubr.bf16.mxu0 0
        %358 = vmatmul.mubr.bf16.gmra.mxu0 %v302
        %v359 = vpop.f32.mrf.mxu0
        %v360 = vadd.f32 %v240, %v359
        %v361 = vpop.f32.mrf.mxu0
        %v362 = vpop.f32.mrf.mxu0
        %v363 = vadd.f32 %v240, %v362
        %v364 = vpop.f32.mrf.mxu0
        %365 = vmatprep.mubr.bf16.mxu0 0
        %366 = vmatmul.mubr.bf16.gmra.mxu0 %v305
        %v367 = vpop.f32.mrf.mxu0
        %v368 = vadd.f32 %v240, %v367
        %v369 = vpop.f32.mrf.mxu0
        %v370 = vpop.f32.mrf.mxu0
        %v371 = vadd.f32 %v240, %v370
        %v372 = vpop.f32.mrf.mxu0
        %373 = vmatprep.mubr.bf16.mxu0 0
        %374 = vmatmul.mubr.bf16.gmra.mxu0 %v308
        %v375 = vpop.f32.mrf.mxu0
        %v376 = vadd.f32 %v240, %v375
        %v377 = vpop.f32.mrf.mxu0
        %v378 = vpop.f32.mrf.mxu0
        %v379 = vadd.f32 %v240, %v378
        %v380 = vpop.f32.mrf.mxu0
        %381 = vmatprep.mubr.bf16.mxu0 0
        %382 = vmatmul.mubr.bf16.gmra.mxu0 %v311
        %v383 = vpop.f32.mrf.mxu0
        %v384 = vadd.f32 %v240, %v383
        %v385 = vpop.f32.mrf.mxu0
        %v386 = vpop.f32.mrf.mxu0
        %v387 = vadd.f32 %v240, %v386
        %v388 = vpop.f32.mrf.mxu0
        %389 = vmatprep.mubr.bf16.mxu0 0
        %390 = vmatmul.mubr.bf16.gmra.mxu0 %v314
        %v391 = vpop.f32.mrf.mxu0
        %v392 = vadd.f32 %v240, %v391
        %v393 = vpop.f32.mrf.mxu0
        %v394 = vpop.f32.mrf.mxu0
        %v395 = vadd.f32 %v240, %v394
        %v396 = vpop.f32.mrf.mxu0
        %397 = vmatprep.mubr.bf16.mxu0 0
        %398 = vmatmul.mubr.bf16.gmra.mxu0 %v317
        %v399 = vpop.f32.mrf.mxu0
        %v400 = vadd.f32 %v240, %v399
        %v401 = vpop.f32.mrf.mxu0
        %v402 = vpop.f32.mrf.mxu0
        %v403 = vadd.f32 %v240, %v402
        %v404 = vpop.f32.mrf.mxu0
        %405 = vmatprep.mubr.bf16.mxu0 0
        %406 = vmatmul.mubr.bf16.gmra.mxu0 %v320
        %v407 = vpop.f32.mrf.mxu0
        %v408 = vadd.f32 %v240, %v407
        %v409 = vpop.f32.mrf.mxu0
        %v410 = vpop.f32.mrf.mxu0
        %v411 = vadd.f32 %v240, %v410
        %v412 = vpop.f32.mrf.mxu0
        %413 = vmatprep.mubr.bf16.mxu0 0
        %414 = vmatmul.mubr.bf16.gmra.mxu0 %v323
        %v415 = vpop.f32.mrf.mxu0
        %v416 = vadd.f32 %v240, %v415
        %v417 = vpop.f32.mrf.mxu0
        %v418 = vpop.f32.mrf.mxu0
        %v419 = vadd.f32 %v240, %v418
        %v420 = vpop.f32.mrf.mxu0
        %421 = vdwg.mxu0
        %vm422 = vcmask 523264
        %423 = vst.msk [vmem:[%s210] sm:$0xff] %vm422, %v360
        %424 = vst.msk [vmem:[%s210 + $0x8] sm:$0xff] %vm422, %v363
        %425 = vst.msk [vmem:[%s210 + $0x10] sm:$0xff] %vm422, %v368
        %426 = vst.msk [vmem:[%s210 + $0x18] sm:$0xff] %vm422, %v371
        %427 = vst.msk [vmem:[%s210 + $0x20] sm:$0xff] %vm422, %v376
        %428 = vst.msk [vmem:[%s210 + $0x28] sm:$0xff] %vm422, %v379
        %429 = vst.msk [vmem:[%s210 + $0x30] sm:$0xff] %vm422, %v384
        %430 = vst.msk [vmem:[%s210 + $0x38] sm:$0xff] %vm422, %v387
        %431 = vst.msk [vmem:[%s210 + $0x40] sm:$0xff] %vm422, %v392
        %432 = vst.msk [vmem:[%s210 + $0x48] sm:$0xff] %vm422, %v395
        %433 = vst.msk [vmem:[%s210 + $0x50] sm:$0xff] %vm422, %v400
        %434 = vst.msk [vmem:[%s210 + $0x58] sm:$0xff] %vm422, %v403
        %435 = vst.msk [vmem:[%s210 + $0x60] sm:$0xff] %vm422, %v408
        %436 = vst.msk [vmem:[%s210 + $0x68] sm:$0xff] %vm422, %v411
        %437 = vst.msk [vmem:[%s210 + $0x70] sm:$0xff] %vm422, %v416
        %438 = vst.msk [vmem:[%s210 + $0x78] sm:$0xff] %vm422, %v419
        %v439 = vsel %vm422, %v360, 0.0
        %v440 = vsel %vm422, %v363, 0.0
        %v441 = vadd.f32 %v439, %v440
        %v442 = vsel %vm422, %v368, 0.0
        %v443 = vadd.f32 %v441, %v442
        %v444 = vsel %vm422, %v371, 0.0
        %v445 = vadd.f32 %v443, %v444
        %v446 = vsel %vm422, %v376, 0.0
        %v447 = vadd.f32 %v445, %v446
        %v448 = vsel %vm422, %v379, 0.0
        %v449 = vadd.f32 %v447, %v448
        %v450 = vsel %vm422, %v384, 0.0
        %v451 = vadd.f32 %v449, %v450
        %v452 = vsel %vm422, %v387, 0.0
        %v453 = vadd.f32 %v451, %v452
        %v454 = vsel %vm422, %v392, 0.0
        %v455 = vadd.f32 %v453, %v454
        %v456 = vsel %vm422, %v395, 0.0
        %v457 = vadd.f32 %v455, %v456
        %v458 = vsel %vm422, %v400, 0.0
        %v459 = vadd.f32 %v457, %v458
        %v460 = vsel %vm422, %v403, 0.0
        %v461 = vadd.f32 %v459, %v460
        %v462 = vsel %vm422, %v408, 0.0
        %v463 = vadd.f32 %v461, %v462
        %v464 = vsel %vm422, %v411, 0.0
        %v465 = vadd.f32 %v463, %v464
        %v466 = vsel %vm422, %v416, 0.0
        %v467 = vadd.f32 %v465, %v466
        %v468 = vsel %vm422, %v419, 0.0
        %v469 = vadd.f32 %v467, %v468
        %v470 = vrot.slane %v469, 4
        %v471 = vadd.f32 %v469, %v470
        %v472 = vrot.slane %v471, 2
        %v473 = vadd.f32 %v471, %v472
        %v474 = vrot.slane %v473, 1
        %v475 = vadd.f32 %v473, %v474
        %v476 = vmul.f32 %v360, %v360
        %v477 = vmul.f32 %v363, %v363
        %v478 = vmul.f32 %v368, %v368
        %v479 = vmul.f32 %v371, %v371
        %v480 = vmul.f32 %v376, %v376
        %v481 = vmul.f32 %v379, %v379
        %v482 = vmul.f32 %v384, %v384
        %v483 = vmul.f32 %v387, %v387
        %v484 = vmul.f32 %v392, %v392
        %v485 = vmul.f32 %v395, %v395
        %v486 = vmul.f32 %v400, %v400
        %v487 = vmul.f32 %v403, %v403
        %v488 = vmul.f32 %v408, %v408
        %v489 = vmul.f32 %v411, %v411
        %v490 = vmul.f32 %v416, %v416
        %v491 = vmul.f32 %v419, %v419
        %v492 = vsel %vm422, %v476, 0.0
        %v493 = vsel %vm422, %v477, 0.0
        %v494 = vadd.f32 %v492, %v493
        %v495 = vsel %vm422, %v478, 0.0
        %v496 = vadd.f32 %v494, %v495
        %v497 = vsel %vm422, %v479, 0.0
        %v498 = vadd.f32 %v496, %v497
        %v499 = vsel %vm422, %v480, 0.0
        %v500 = vadd.f32 %v498, %v499
        %v501 = vsel %vm422, %v481, 0.0
        %v502 = vadd.f32 %v500, %v501
        %v503 = vsel %vm422, %v482, 0.0
        %v504 = vadd.f32 %v502, %v503
        %v505 = vsel %vm422, %v483, 0.0
        %v506 = vadd.f32 %v504, %v505
        %v507 = vsel %vm422, %v484, 0.0
        %v508 = vadd.f32 %v506, %v507
        %v509 = vsel %vm422, %v485, 0.0
        %v510 = vadd.f32 %v508, %v509
        %v511 = vsel %vm422, %v486, 0.0
        %v512 = vadd.f32 %v510, %v511
        %v513 = vsel %vm422, %v487, 0.0
        %v514 = vadd.f32 %v512, %v513
        %v515 = vsel %vm422, %v488, 0.0
        %v516 = vadd.f32 %v514, %v515
        %v517 = vsel %vm422, %v489, 0.0
        %v518 = vadd.f32 %v516, %v517
        %v519 = vsel %vm422, %v490, 0.0
        %v520 = vadd.f32 %v518, %v519
        %v521 = vsel %vm422, %v491, 0.0
        %v522 = vadd.f32 %v520, %v521
        %v523 = vrot.slane %v522, 4
        %v524 = vadd.f32 %v522, %v523
        %v525 = vrot.slane %v524, 2
        %v526 = vadd.f32 %v524, %v525
        %v527 = vrot.slane %v526, 1
        %v528 = vadd.f32 %v526, %v527
        %vm529 = vcmask 1040384
        %v530 = vsel %vm529, %v475, %v528
        %vm531 = vcmask 517120
        %532 = vst.msk [vmem:[%s199] sm:$0x3] %vm531, %v530
        %s533 = smul.u32 16, %s19
        %p534 = scmp.lt.s32.totalorder %s533, 31
        %s535 = scalar_select %p534, %s533, 31
        %s536 = smul.addr %s535, 8
        %s537 = scalar_lea.vmem %s3, %s536
        %s538 = sand.u32 %s121, 1
        %s539 = scalar_lea.sflag [#allocation3], %s538
        %s540 = sand.u32 %s121, 1
        %s541 = smul.addr %s540, 2
        %s542 = scalar_lea.vmem [#allocation2], %s541
        // Predicated region
        $region33: #{tpu_custom_call.1} parent=31 // pred_check
          %p543 = pneg %p105
        $region34: #{tpu_custom_call.1} parent=31 // pred_check_branch
          %545 = sbr.rel (%p543) target = $region36
        $region35: #{tpu_custom_call.1} parent=31 // pred_region
          %s546 = smul.u32 16, %s19
        $region36: #{tpu_custom_call.1} parent=31 // pred_fallthru
          _
        // Predicated region
        $region37: #{tpu_custom_call.1} parent=31 // pred_check
          %p547 = pneg %p131
        $region38: #{tpu_custom_call.1} parent=31 // pred_check_branch
          %549 = sbr.rel (%p547) target = $region40
        $region39: #{tpu_custom_call.1} parent=31 // pred_region
          %s551 = ssub.s32 32, 32
          %552 = vsyncadd %s539, %s551
          %s553 = smul.addr %s19, 32
          %s554 = scalar_lea.hbm %s4, %s553
          %s556 = sshll.u32 %s542, 4
          %s557 = int_to_ptr.vmem [resolvable:$true] %s556
          %559 = dma.vmem_to_hbm [thread:$0]  %s557, 32, %s554, %s539
        $region40: #{tpu_custom_call.1} parent=31 // pred_fallthru
          _
      $region32: #{tpu_custom_call.1} parent=5 // pred_fallthru
        _
      %p560 = scmp.le.s32.totalorder 2, %s14
      // Predicated region
      $region41: #{tpu_custom_call.1} parent=5 // pred_check
        %p561 = pneg %p560
      $region42: #{tpu_custom_call.1} parent=5 // pred_check_branch
        %563 = sbr.rel (%p561) target = $region44
      $region43: #{tpu_custom_call.1} parent=5 // pred_region
        %s564 = ssub.s32 %s14, 2
        // Predicated region
        $region45: #{tpu_custom_call.1} parent=43 // pred_check
          %p565 = pneg %p111
        $region46: #{tpu_custom_call.1} parent=43 // pred_check_branch
          %567 = sbr.rel (%p565) target = $region48
        $region47: #{tpu_custom_call.1} parent=43 // pred_region
          %s568 = smul.u32 16, %s20
          %p569 = scmp.lt.s32.totalorder %s568, 31
          %s570 = scalar_select %p569, %s568, 31
          %s571 = smul.addr %s570, 8
          %s572 = scalar_lea.vmem %s3, %s571
        $region48: #{tpu_custom_call.1} parent=43 // pred_fallthru
          _
        // Predicated region
        $region49: #{tpu_custom_call.1} parent=43 // pred_check
          %p573 = pneg %p137
        $region50: #{tpu_custom_call.1} parent=43 // pred_check_branch
          %575 = sbr.rel (%p573) target = $region52
        $region51: #{tpu_custom_call.1} parent=43 // pred_region
          %s576 = sand.u32 %s122, 1
          %s577 = scalar_lea.sflag [#allocation3], %s576
          %s578 = sand.u32 %s122, 1
          %s579 = smul.addr %s578, 2
          %s580 = scalar_lea.vmem [#allocation2], %s579
          %581 = dma.done %s577, 32
        $region52: #{tpu_custom_call.1} parent=43 // pred_fallthru
          _
      $region44: #{tpu_custom_call.1} parent=5 // pred_fallthru
        _
    $region6: #{tpu_custom_call.1} parent=1 // loop_footer
      %s18 = sadd.s32 1, %s14
    $region7: #{tpu_custom_call.1} parent=1 // loop_footer_branch
      %13 = sbr.rel target = $region3
    $region8: #{tpu_custom_call.1} parent=1 // loop_exit
      _
    %582 = vsyncpa [#allocation3], 1
    %s583 = scalar_lea.sflag [#allocation3], 1
    %584 = vsyncpa %s583, 1

</llo_original>
